<compile_context>
chip_gen: v7x
topology: tpu7x:2x2x1
jax: 0.10.0
libtpu: 0.0.40
codegen_flags: <defaults>
</compile_context>

<pallas_src>
import functools

import jax
import jax.numpy as jnp
from jax.experimental import pallas as pl
from jax.experimental.pallas import tpu as pltpu
import numpy as np


# ---------------------------------------------------------------------------
# Block-size selection + batch padding helpers
# ---------------------------------------------------------------------------
def _dot_block_b(B, N, H, *, target_bytes=1 << 20, max_bt=128):
    """dot mode is HBM/overhead-bound: size the (Bt, N, H) f32 block toward
    ~1 MiB.  Capped at max_bt to bound the in-kernel batched-matmul unroll;
    callers with very large B can pass block_b explicitly."""
    per_batch = max(N * H * 4, 1)
    return max(1, min(B, target_bytes // per_batch, max_bt))


def _dcmn_block_b(B, N, *, target_rows=256):
    """dcmn mode is MXU-bound: pick Bt so Bt*N ~ target MXU M rows
    (128 on v5e, 256 on v6e/v7x; 256 is a safe cross-generation default)."""
    return max(1, min(B, max(1, target_rows // max(N, 1))))


def _pad_batch(x, Bt):
    """Pad the batch dim up to a multiple of Bt with zeros (sliced off after).
    Zero-padded batches produce finite garbage that is discarded."""
    B = x.shape[0]
    Bp = ((B + Bt - 1) // Bt) * Bt
    if Bp == B:
        return x, B
    pad = [(0, Bp - B)] + [(0, 0)] * (x.ndim - 1)
    return jnp.pad(x, pad), B


# ---------------------------------------------------------------------------
# 'dot' mode kernel:  softmax(O O^T / 28) @ O   (block of Bt batches at once)
# ---------------------------------------------------------------------------
def _dot_kernel(opt_ref, out_ref):
    o = opt_ref[...]  # (Bt, N, H) float32
    # att_matrix = O @ O^T / 28 ; contract shared H axis (no transpose tile).
    s = jnp.einsum("bnh,bmh->bnm", o, o,
                   preferred_element_type=jnp.float32) * (1.0 / 28.0)
    # softmax along last dim (matches torch.nn.functional.softmax)
    s_max = jnp.max(s, axis=-1, keepdims=True)
    p = jnp.exp(s - s_max)
    inv = pl.reciprocal(jnp.sum(p, axis=-1, keepdims=True), approx=True)
    w = p * inv
    # att_vec = att_weight @ O
    out_ref[...] = jnp.einsum(
        "bnm,bmh->bnh", w, o, preferred_element_type=jnp.float32
    ).astype(out_ref.dtype)


def option_atten_dot(options, *, block_b=None,
                     vmem_limit_bytes=32 * 1024 * 1024):
    B, N, H = options.shape
    Bt = block_b if block_b is not None else _dot_block_b(B, N, H)
    x, B_orig = _pad_batch(options, Bt)
    Bp = x.shape[0]

    out = pl.pallas_call(
        _dot_kernel,
        out_shape=jax.ShapeDtypeStruct((Bp, N, H), options.dtype),
        grid_spec=pltpu.PrefetchScalarGridSpec(
            num_scalar_prefetch=0,
            grid=(Bp // Bt,),
            in_specs=[pl.BlockSpec((Bt, N, H), lambda b: (b, 0, 0))],
            out_specs=pl.BlockSpec((Bt, N, H), lambda b: (b, 0, 0)),
        ),
        compiler_params=pltpu.CompilerParams(
            dimension_semantics=("parallel",),
            vmem_limit_bytes=vmem_limit_bytes),
    )(x)
    return out[:B_orig] if Bp != B_orig else out


# ---------------------------------------------------------------------------
# 'dcmn' mode: one-time weight preparation (hoist out of the forward pass)
# ---------------------------------------------------------------------------
def prepare_dcmn_weights(w5, w7, w8, b8, *, compute_dtype=jnp.bfloat16):
    """Do ONCE at model init:
       * nn.Linear stores W as (out, in) and computes x @ W^T -> pre-transpose.
       * Cast to bf16 MXU operands (accumulation stays f32 in the kernel).
       * Stack w7^T over w8^T into a single (2H, H) RHS so the gate
         w7(other) + w8(options) is one fused GEMM over the concatenated
         [other, options] K axis.
    NOTE: w7 is bias=False in the module; only w8's bias exists and is b8."""
    H = w5.shape[0]
    w5t = jnp.asarray(w5.T, dtype=compute_dtype)                   # (H, H)
    w_gate = jnp.concatenate(
        [jnp.asarray(w7.T, dtype=compute_dtype),
         jnp.asarray(w8.T, dtype=compute_dtype)], axis=0)          # (2H, H)
    b8_2d = jnp.asarray(b8, dtype=jnp.float32).reshape(1, H)
    return w5t, w_gate, b8_2d


# ---------------------------------------------------------------------------
# 'dcmn' mode kernel (dense block-diagonal-masked attention, bf16 operands)
# ---------------------------------------------------------------------------
def _dcmn_kernel(opt_ref, w5t_ref, wgate_ref, b8_ref, out_ref, *,
                 compute_dtype):
    o = opt_ref[...]                              # (Bt, N, H) float32
    Bt, N, H = o.shape
    M = Bt * N
    o2 = o.reshape(M, H)
    o2_c = o2.astype(compute_dtype)

    # transed_options = options @ w5^T  (bf16 operands, f32 accumulation)
    t_c = jnp.dot(o2_c, w5t_ref[...],
                  preferred_element_type=jnp.float32).astype(compute_dtype)

    # G = softmax(transed @ options^T) per batch, computed as ONE dense (M, M)
    # GEMM with cross-batch (off block-diagonal) logits masked before the
    # softmax -> lane-dense softmax, only 2D MXU matmuls, ~6 weight-tile loads
    # instead of a fresh 768-deep RHS tile per batch.
    logits = jnp.einsum("nh,mh->nm", t_c, o2_c,
                        preferred_element_type=jnp.float32)        # (M, M)
    row_b = jax.lax.broadcasted_iota(jnp.int32, (M, M), 0) // N
    col_b = jax.lax.broadcasted_iota(jnp.int32, (M, M), 1) // N
    logits = jnp.where(row_b == col_b, logits, -1e30)
    mx = jnp.max(logits, axis=-1, keepdims=True)
    e = jnp.exp(logits - mx)                       # masked entries -> exactly 0
    inv = pl.reciprocal(jnp.sum(e, axis=-1, keepdims=True), approx=True)
    G = (e * inv).astype(compute_dtype)            # (M, M), zero off-block

    # H = relu(G @ options); zeros off-block keep batches independent.
    Hm = jnp.maximum(
        jnp.dot(G, o2_c, preferred_element_type=jnp.float32), 0.0)  # (M, H)

    # other_option_mean = ((1 - eye(N))/(N-1)) @ H
    #                   = (sum_over_options - H) / (N-1)   (VPU, no mask matmul)
    denom = max(N - 1, 1)   # NOTE: PyTorch divides by (N-1) and NaNs at N==1.
    Hm3 = Hm.reshape(Bt, N, H)
    other = ((jnp.sum(Hm3, axis=1, keepdims=True) - Hm3)
             * (1.0 / denom)).reshape(M, H)

    # g = sigmoid(w7(other) + w8(options) + b8): single fused GEMM over the
    # concatenated K axis [other, options] with RHS [w7^T; w8^T].
    cat = jnp.concatenate([other.astype(compute_dtype), o2_c], axis=-1)
    gate = jax.nn.sigmoid(
        jnp.dot(cat, wgate_ref[...], preferred_element_type=jnp.float32)
        + b8_ref[...])

    # g*H + (1-g)*other  ==  other + g*(H - other)
    out = other + gate * (Hm - other)
    out_ref[...] = out.reshape(Bt, N, H).astype(out_ref.dtype)


def option_atten_dcmn(options, prepared_weights, *, block_b=None,
                      compute_dtype=jnp.bfloat16,
                      vmem_limit_bytes=32 * 1024 * 1024):
    w5t, w_gate, b8_2d = prepared_weights
    B, N, H = options.shape
    Bt = block_b if block_b is not None else _dcmn_block_b(B, N)
    x, B_orig = _pad_batch(options, Bt)
    Bp = x.shape[0]

    kernel = functools.partial(_dcmn_kernel, compute_dtype=compute_dtype)
    out = pl.pallas_call(
        kernel,
        out_shape=jax.ShapeDtypeStruct((Bp, N, H), options.dtype),
        grid_spec=pltpu.PrefetchScalarGridSpec(
            num_scalar_prefetch=0,
            grid=(Bp // Bt,),
            in_specs=[
                pl.BlockSpec((Bt, N, H), lambda b: (b, 0, 0)),
                # Constant index_map -> the block stays resident across grid
                # steps (no re-DMA); only the spare pipeline buffer costs VMEM.
                pl.BlockSpec((H, H), lambda b: (0, 0)),        # w5^T
                pl.BlockSpec((2 * H, H), lambda b: (0, 0)),    # [w7^T; w8^T]
                pl.BlockSpec((1, H), lambda b: (0, 0)),        # b8
            ],
            out_specs=pl.BlockSpec((Bt, N, H), lambda b: (b, 0, 0)),
        ),
        compiler_params=pltpu.CompilerParams(
            dimension_semantics=("parallel",),
            vmem_limit_bytes=vmem_limit_bytes),
    )(x, w5t, w_gate, b8_2d)
    return out[:B_orig] if Bp != B_orig else out


# ---------------------------------------------------------------------------
# Pure-JAX references (for sanity checking)
# ---------------------------------------------------------------------------
def _ref_dot(options):
    s = jnp.einsum("bnh,bmh->bnm", options, options) / 28.0
    w = jax.nn.softmax(s, axis=-1)
    return jnp.einsum("bnm,bmh->bnh", w, options)


def _ref_dcmn(options, w5, w7, w8, b8):
    B, N, H = options.shape
    t = options @ w5.T
    G = jax.nn.softmax(jnp.einsum("bnh,bmh->bnm", t, options), axis=-1)
    Hmat = jax.nn.relu(jnp.einsum("bnm,bmh->bnh", G, options))
    mask = (1.0 - jnp.eye(N)) / (N - 1)
    other = jnp.einsum("nm,bmh->bnh", mask, Hmat)
    gate = jax.nn.sigmoid(other @ w7.T + options @ w8.T + b8)
    return gate * Hmat + (1.0 - gate) * other


if __name__ == "__main__":
    key = jax.random.PRNGKey(0)

    # ---- 'dot' mode (default in the PyTorch module) -----------------------
    B, N, H = 2, 8, 128
    k0, key = jax.random.split(key)
    options = jax.random.normal(k0, (B, N, H), dtype=jnp.float32)

    out_dot = jax.block_until_ready(option_atten_dot(options))
    ref_dot = _ref_dot(options)
    np.testing.assert_allclose(np.asarray(out_dot), np.asarray(ref_dot),
                               rtol=2e-2, atol=2e-2)

    # ---- 'dcmn' mode (hidden must be 768 to match module __init__) --------
    Hd, Nd = 768, 8
    k1, k2, k3, k4, k5, key = jax.random.split(key, 6)
    options_d = jax.random.normal(k1, (B, Nd, Hd), dtype=jnp.float32) * 0.1
    # Deterministic, synthetic weight init (nn.Linear shapes: (out, in)).
    w5 = jax.random.normal(k2, (Hd, Hd), dtype=jnp.float32) * (1.0 / np.sqrt(Hd))
    w7 = jax.random.normal(k3, (Hd, Hd), dtype=jnp.float32) * (1.0 / np.sqrt(Hd))
    w8 = jax.random.normal(k4, (Hd, Hd), dtype=jnp.float32) * (1.0 / np.sqrt(Hd))
    b8 = jax.random.normal(k5, (Hd,), dtype=jnp.float32) * 0.01

    prepared = prepare_dcmn_weights(w5, w7, w8, b8)   # one-time, hoisted
    out_dcmn = jax.block_until_ready(option_atten_dcmn(options_d, prepared))
    ref_dcmn = _ref_dcmn(options_d, w5, w7, w8, b8)
    np.testing.assert_allclose(np.asarray(out_dcmn), np.asarray(ref_dcmn),
                               rtol=2e-2, atol=2e-2)

    print("KERNEL_OK")
</pallas_src>

<mosaic_0001>
module attributes {stable_mosaic.version = 11 : i64} {
  func.func @_dot_kernel(%arg0: i32, %arg1: memref<2x8x128xf32, #tpu.memory_space<vmem>>, %arg2: memref<2x8x128xf32, #tpu.memory_space<vmem>>) attributes {dimension_semantics = [#tpu.dimension_semantics<parallel>], iteration_bounds = array<i64: 1>, scalar_prefetch = 0 : i64, scratch_operands = 0 : i64, tpu.core_type = #tpu.core_type<tc>, window_params = [{transform_indices = @transform_0, window_bounds = array<i64: 2, 8, 128>}, {transform_indices = @transform_1, window_bounds = array<i64: 2, 8, 128>}]} {
    %c0 = arith.constant 0 : index
    %c0_0 = arith.constant 0 : index
    %c0_1 = arith.constant 0 : index
    %0 = vector.load %arg1[%c0, %c0_0, %c0_1] : memref<2x8x128xf32, #tpu.memory_space<vmem>>, vector<2x8x128xf32>
    "tpu.trace_start"() <{level = 10 : i32, message = "bnh,bmh->bnm"}> : () -> ()
    %cst = arith.constant dense<0.000000e+00> : vector<2x8x8xf32>
    %1 = tpu.matmul %0, %0, %cst {dimension_numbers = #tpu.dot_dimension_numbers<[2], [2], [1], [1], [0, 0, 0, 1, 1, 1], [0], [0]>} : vector<2x8x128xf32>, vector<2x8x128xf32>, vector<2x8x8xf32> -> vector<2x8x8xf32>
    "tpu.trace_stop"() : () -> ()
    %cst_2 = arith.constant 0.0357142873 : f32
    %2 = vector.broadcast %cst_2 : f32 to vector<2x8x8xf32>
    %3 = arith.mulf %1, %2 : vector<2x8x8xf32>
    %cst_3 = arith.constant dense<0xFF800000> : vector<2x8xf32>
    %4 = vector.multi_reduction <maximumf>, %3, %cst_3 [2] : vector<2x8x8xf32> to vector<2x8xf32>
    %5 = vector.shape_cast %4 : vector<2x8xf32> to vector<2x8x1xf32>
    %6 = vector.broadcast %5 : vector<2x8x1xf32> to vector<2x8x8xf32>
    %7 = arith.subf %3, %6 : vector<2x8x8xf32>
    %8 = math.exp %7 : vector<2x8x8xf32>
    %cst_4 = arith.constant dense<0.000000e+00> : vector<2x8xf32>
    %9 = vector.multi_reduction <add>, %8, %cst_4 [2] : vector<2x8x8xf32> to vector<2x8xf32>
    %10 = vector.shape_cast %9 : vector<2x8xf32> to vector<2x8x1xf32>
    %11 = tpu.reciprocal %10 {approx = true} : vector<2x8x1xf32> -> vector<2x8x1xf32>
    %12 = vector.broadcast %11 : vector<2x8x1xf32> to vector<2x8x8xf32>
    %13 = arith.mulf %8, %12 : vector<2x8x8xf32>
    "tpu.trace_start"() <{level = 10 : i32, message = "bnm,bmh->bnh"}> : () -> ()
    %cst_5 = arith.constant dense<0.000000e+00> : vector<2x8x128xf32>
    %14 = tpu.matmul %13, %0, %cst_5 {dimension_numbers = #tpu.dot_dimension_numbers<[2], [1], [1], [2], [0, 0, 0, 1, 1, 2], [0], [0]>} : vector<2x8x8xf32>, vector<2x8x128xf32>, vector<2x8x128xf32> -> vector<2x8x128xf32>
    "tpu.trace_stop"() : () -> ()
    %c0_6 = arith.constant 0 : index
    %c0_7 = arith.constant 0 : index
    %c0_8 = arith.constant 0 : index
    %15 = vector.load %arg2[%c0_6, %c0_7, %c0_8] : memref<2x8x128xf32, #tpu.memory_space<vmem>>, vector<2x8x128xf32>
    tpu.vector_store %arg2[%c0_6, %c0_7, %c0_8], %14 {strides = array<i32>} : memref<2x8x128xf32, #tpu.memory_space<vmem>>, vector<2x8x128xf32>,
    return
  }
  func.func @transform_0(%arg0: i32) -> (i32, i32, i32) {
    %c0_i32 = arith.constant 0 : i32
    %c0_i32_0 = arith.constant 0 : i32
    %c0_i32_1 = arith.constant 0 : i32
    return %arg0, %c0_i32, %c0_i32_0 : i32, i32, i32
  }
  func.func @transform_1(%arg0: i32) -> (i32, i32, i32) {
    %c0_i32 = arith.constant 0 : i32
    %c0_i32_0 = arith.constant 0 : i32
    %c0_i32_1 = arith.constant 0 : i32
    return %arg0, %c0_i32, %c0_i32_0 : i32, i32, i32
  }
}

</mosaic_0001>

<llo_original>
// kernel: tpu_custom_call.1
$region0: #{tpu_custom_call.1}
  #allocation0 [shape = 'u32[]', space=smem, size = 0x4, offset = 0x4, fixed_abs, tag = 'smem constant byte address 0x4 - core index']
  #allocation1 [shape = 'u32[144,128]{1,0:T(1,128)}', space=vmem, size = 0x12000, scoped, tag = 'internal scratch']
  %s0 = inlined_call_operand.hbm [shape: f32[2,8,128], index: 0, kind: input, shape index: {}]
  %s1 = inlined_call_operand.hbm [shape: f32[2,8,128], index: 1, kind: output, shape index: {}]
  %s2 = sld [smem:[#allocation0]]
  $region18: #{tpu_custom_call.1} parent=0
    _
  %s4 = ssub.s32 1, %s2
  %s5 = scalar_select 0, %s4, %s2
  $region1: #{tpu_custom_call.1} parent=0
    #allocation2 [shape = 'u8[8192]{0}', space=vmem, size = 0x2000, scoped, tag = 'input window, operand 0, single buffered']
    #allocation3 [shape = 's32[1]{0}', space=sflag, size = 0x4, scoped, tag = 'scoped memory for tpu_custom_call.1']
    #allocation4 [shape = 's32[1]{0}', space=sflag, size = 0x4, scoped, tag = 'scoped memory for tpu_custom_call.1']
    #allocation5 [shape = 'u8[8192]{0}', space=vmem, size = 0x2000, scoped, tag = 'output window, operand 0, single buffered']
    %6 = vsyncpa [#allocation3], 0
    %7 = vsyncpa [#allocation4], 0
    // Predicated region
    $region2: #{tpu_custom_call.1} parent=1 // pred_check
      _
    $region3: #{tpu_custom_call.1} parent=1 // pred_check_branch
      %9 = sbr.rel (0) target = $region5
    $region4: #{tpu_custom_call.1} parent=1 // pred_region
      %s11 = ssub.s32 256, 256
      %12 = vsyncadd [#allocation3], %s11
      %s13 = sshll.u32 [#allocation2], 4
      %s14 = int_to_ptr.vmem [resolvable:$true] %s13
      %19 = dma.hbm_to_vmem [thread:$0]  %s0, 256, %s14, [#allocation3], 128, 128, 8
    $region5: #{tpu_custom_call.1} parent=1 // pred_fallthru
      _
    // Predicated region
    $region6: #{tpu_custom_call.1} parent=1 // pred_check
      _
    $region7: #{tpu_custom_call.1} parent=1 // pred_check_branch
      %21 = sbr.rel (0) target = $region9
    $region8: #{tpu_custom_call.1} parent=1 // pred_region
      %22 = dma.done [#allocation3], 256
    $region9: #{tpu_custom_call.1} parent=1 // pred_fallthru
      _
    %v23 = vld [vmem:[#allocation2] sm:$0xff]
    %v24 = vld [vmem:[#allocation2 + $0x8] sm:$0xff]
    %25 = vmatprep.subr.mxu0 0.0
    %26 = vmatpush1.xpose.msra.mxu0 %v23
    %27 = vmatprep.subr.mxu0 0.0
    %28 = vmatpush1.xpose.msra.mxu0 0.0
    %29 = vmatprep.subr.mxu0 0.0
    %30 = vmatpush1.xpose.msra.mxu0 0.0
    %31 = vmatprep.subr.mxu0 0.0
    %32 = vmatpush1.xpose.msra.mxu0 0.0
    %33 = vmatprep.subr.mxu0 0.0
    %34 = vmatpush1.xpose.msra.mxu0 0.0
    %35 = vmatprep.subr.mxu0 0.0
    %36 = vmatpush1.xpose.msra.mxu0 0.0
    %37 = vmatprep.subr.mxu0 0.0
    %38 = vmatpush1.xpose.msra.mxu0 0.0
    %39 = vmatprep.subr.mxu0 0.0
    %40 = vmatpush1.xpose.msra.mxu0 0.0
    %41 = vmatprep.subr.mxu0 0.0
    %42 = vmatpush1.xpose.msra.mxu0 0.0
    %43 = vmatprep.subr.mxu0 0.0
    %44 = vmatpush1.xpose.msra.mxu0 0.0
    %45 = vmatprep.subr.mxu0 0.0
    %46 = vmatpush1.xpose.msra.mxu0 0.0
    %47 = vmatprep.subr.mxu0 0.0
    %48 = vmatpush1.xpose.msra.mxu0 0.0
    %49 = vmatprep.subr.mxu0 0.0
    %50 = vmatpush1.xpose.msra.mxu0 0.0
    %51 = vmatprep.subr.mxu0 0.0
    %52 = vmatpush1.xpose.msra.mxu0 0.0
    %53 = vmatprep.subr.mxu0 0.0
    %54 = vmatpush1.xpose.msra.mxu0 0.0
    %55 = vmatprep.subr.mxu0 0.0
    %56 = vmatpush1.xpose.msra.mxu0 0.0
    %57 = vmatprep.subr.mxu0 0.0
    %58 = vmatpush1.xpose.msra.mxu0 0.0
    %59 = vmatprep.subr.mxu0 0.0
    %60 = vmatpush1.xpose.msra.mxu0 0.0
    %61 = vmatprep.subr.mxu0 0.0
    %62 = vmatpush1.xpose.msra.mxu0 0.0
    %63 = vmatprep.subr.mxu0 0.0
    %64 = vmatpush1.xpose.msra.mxu0 0.0
    %65 = vmatprep.subr.mxu0 0.0
    %66 = vmatpush1.xpose.msra.mxu0 0.0
    %67 = vmatprep.subr.mxu0 0.0
    %68 = vmatpush1.xpose.msra.mxu0 0.0
    %69 = vmatprep.subr.mxu0 0.0
    %70 = vmatpush1.xpose.msra.mxu0 0.0
    %71 = vmatprep.subr.mxu0 0.0
    %72 = vmatpush1.xpose.msra.mxu0 0.0
    %73 = vmatprep.subr.mxu0 0.0
    %74 = vmatpush1.xpose.msra.mxu0 0.0
    %75 = vmatprep.subr.mxu0 0.0
    %76 = vmatpush1.xpose.msra.mxu0 0.0
    %77 = vmatprep.subr.mxu0 0.0
    %78 = vmatpush1.xpose.msra.mxu0 0.0
    %79 = vmatprep.subr.mxu0 0.0
    %80 = vmatpush1.xpose.msra.mxu0 0.0
    %81 = vmatprep.subr.mxu0 0.0
    %82 = vmatpush1.xpose.msra.mxu0 0.0
    %83 = vmatprep.subr.mxu0 0.0
    %84 = vmatpush1.xpose.msra.mxu0 0.0
    %85 = vmatprep.subr.mxu0 0.0
    %86 = vmatpush1.xpose.msra.mxu0 0.0
    %87 = vmatprep.subr.mxu0 0.0
    %88 = vmatpush1.xpose.msra.mxu0 0.0
    %89 = vmatprep.mubr.f32.mxu0 0.0
    %90 = vmatmul.mubr.f32.gmra.mrb[0].mxu0 %v23
    %v91 = vpop.f32.mrb[0].mxu0
    %v92 = vadd.f32 0.0, %v91
    %v93 = vpop.f32.mrb[0].mxu0
    %94 = vdwg.mxu0
    %95 = vmatprep.subr.mxu0 0.0
    %96 = vmatpush1.xpose.msra.mxu0 %v24
    %97 = vmatprep.subr.mxu0 0.0
    %98 = vmatpush1.xpose.msra.mxu0 0.0
    %99 = vmatprep.subr.mxu0 0.0
    %100 = vmatpush1.xpose.msra.mxu0 0.0
    %101 = vmatprep.subr.mxu0 0.0
    %102 = vmatpush1.xpose.msra.mxu0 0.0
    %103 = vmatprep.subr.mxu0 0.0
    %104 = vmatpush1.xpose.msra.mxu0 0.0
    %105 = vmatprep.subr.mxu0 0.0
    %106 = vmatpush1.xpose.msra.mxu0 0.0
    %107 = vmatprep.subr.mxu0 0.0
    %108 = vmatpush1.xpose.msra.mxu0 0.0
    %109 = vmatprep.subr.mxu0 0.0
    %110 = vmatpush1.xpose.msra.mxu0 0.0
    %111 = vmatprep.subr.mxu0 0.0
    %112 = vmatpush1.xpose.msra.mxu0 0.0
    %113 = vmatprep.subr.mxu0 0.0
    %114 = vmatpush1.xpose.msra.mxu0 0.0
    %115 = vmatprep.subr.mxu0 0.0
    %116 = vmatpush1.xpose.msra.mxu0 0.0
    %117 = vmatprep.subr.mxu0 0.0
    %118 = vmatpush1.xpose.msra.mxu0 0.0
    %119 = vmatprep.subr.mxu0 0.0
    %120 = vmatpush1.xpose.msra.mxu0 0.0
    %121 = vmatprep.subr.mxu0 0.0
    %122 = vmatpush1.xpose.msra.mxu0 0.0
    %123 = vmatprep.subr.mxu0 0.0
    %124 = vmatpush1.xpose.msra.mxu0 0.0
    %125 = vmatprep.subr.mxu0 0.0
    %126 = vmatpush1.xpose.msra.mxu0 0.0
    %127 = vmatprep.subr.mxu0 0.0
    %128 = vmatpush1.xpose.msra.mxu0 0.0
    %129 = vmatprep.subr.mxu0 0.0
    %130 = vmatpush1.xpose.msra.mxu0 0.0
    %131 = vmatprep.subr.mxu0 0.0
    %132 = vmatpush1.xpose.msra.mxu0 0.0
    %133 = vmatprep.subr.mxu0 0.0
    %134 = vmatpush1.xpose.msra.mxu0 0.0
    %135 = vmatprep.subr.mxu0 0.0
    %136 = vmatpush1.xpose.msra.mxu0 0.0
    %137 = vmatprep.subr.mxu0 0.0
    %138 = vmatpush1.xpose.msra.mxu0 0.0
    %139 = vmatprep.subr.mxu0 0.0
    %140 = vmatpush1.xpose.msra.mxu0 0.0
    %141 = vmatprep.subr.mxu0 0.0
    %142 = vmatpush1.xpose.msra.mxu0 0.0
    %143 = vmatprep.subr.mxu0 0.0
    %144 = vmatpush1.xpose.msra.mxu0 0.0
    %145 = vmatprep.subr.mxu0 0.0
    %146 = vmatpush1.xpose.msra.mxu0 0.0
    %147 = vmatprep.subr.mxu0 0.0
    %148 = vmatpush1.xpose.msra.mxu0 0.0
    %149 = vmatprep.subr.mxu0 0.0
    %150 = vmatpush1.xpose.msra.mxu0 0.0
    %151 = vmatprep.subr.mxu0 0.0
    %152 = vmatpush1.xpose.msra.mxu0 0.0
    %153 = vmatprep.subr.mxu0 0.0
    %154 = vmatpush1.xpose.msra.mxu0 0.0
    %155 = vmatprep.subr.mxu0 0.0
    %156 = vmatpush1.xpose.msra.mxu0 0.0
    %157 = vmatprep.subr.mxu0 0.0
    %158 = vmatpush1.xpose.msra.mxu0 0.0
    %159 = vmatprep.mubr.f32.mxu0 0.0
    %160 = vmatmul.mubr.f32.gmra.mrb[0].mxu0 %v24
    %v161 = vpop.f32.mrb[0].mxu0
    %v162 = vadd.f32 0.0, %v161
    %v163 = vpop.f32.mrb[0].mxu0
    %164 = vdwg.mxu0
    %v165 = vmul.f32 %v92, 0.035714287
    %v166 = vmul.f32 %v162, 0.035714287
    %vm167 = vcmask 64512
    %v168 = vsel %vm167, %v165, -inf
    %169 = vmax.xlane.f32.xlu0 %v168
    %v170 = vpop.xlane.xlu0 %169
    %v171 = vsel %vm167, %v166, -inf
    %172 = vmax.xlane.f32.xlu0 %v171
    %v173 = vpop.xlane.xlu0 %172
    %v174 = vsub.f32 %v165, %v170
    %v175 = vsub.f32 %v166, %v173
    %v176 = vmul.f32 %v174, 1.442695
    %v177 = vpow.pop %v176
    %v178 = vmul.f32 %v175, 1.442695
    %v179 = vpow.pop %v178
    %v180 = vsel %vm167, %v177, 0.0
    %181 = vadd.xlane.f32.xlu0 %v180
    %v182 = vpop.xlane.xlu0 %181
    %v183 = vsel %vm167, %v179, 0.0
    %184 = vadd.xlane.f32.xlu0 %v183
    %v185 = vpop.xlane.xlu0 %184
    %v186 = vrcp.pop %v182
    %v187 = vrcp.pop %v185
    %v188 = vmul.f32 %v177, %v186
    %v189 = vmul.f32 %v179, %v187
    %v191 = vsel %vm167, %v188, 0
    %193 = vmatprep.subr.mxu0 0.0
    %194 = vmatpush1.msra.mxu0 %v23
    %195 = vmatprep.subr.mxu0 0.0
    %196 = vmatpush1.msra.mxu0 0.0
    %197 = vmatprep.subr.mxu0 0.0
    %198 = vmatpush1.msra.mxu0 0.0
    %199 = vmatprep.subr.mxu0 0.0
    %200 = vmatpush1.msra.mxu0 0.0
    %201 = vmatprep.subr.mxu0 0.0
    %202 = vmatpush1.msra.mxu0 0.0
    %203 = vmatprep.subr.mxu0 0.0
    %204 = vmatpush1.msra.mxu0 0.0
    %205 = vmatprep.subr.mxu0 0.0
    %206 = vmatpush1.msra.mxu0 0.0
    %207 = vmatprep.subr.mxu0 0.0
    %208 = vmatpush1.msra.mxu0 0.0
    %209 = vmatprep.subr.mxu0 0.0
    %210 = vmatpush1.msra.mxu0 0.0
    %211 = vmatprep.subr.mxu0 0.0
    %212 = vmatpush1.msra.mxu0 0.0
    %213 = vmatprep.subr.mxu0 0.0
    %214 = vmatpush1.msra.mxu0 0.0
    %215 = vmatprep.subr.mxu0 0.0
    %216 = vmatpush1.msra.mxu0 0.0
    %217 = vmatprep.subr.mxu0 0.0
    %218 = vmatpush1.msra.mxu0 0.0
    %219 = vmatprep.subr.mxu0 0.0
    %220 = vmatpush1.msra.mxu0 0.0
    %221 = vmatprep.subr.mxu0 0.0
    %222 = vmatpush1.msra.mxu0 0.0
    %223 = vmatprep.subr.mxu0 0.0
    %224 = vmatpush1.msra.mxu0 0.0
    %225 = vmatprep.subr.mxu0 0.0
    %226 = vmatpush1.msra.mxu0 0.0
    %227 = vmatprep.subr.mxu0 0.0
    %228 = vmatpush1.msra.mxu0 0.0
    %229 = vmatprep.subr.mxu0 0.0
    %230 = vmatpush1.msra.mxu0 0.0
    %231 = vmatprep.subr.mxu0 0.0
    %232 = vmatpush1.msra.mxu0 0.0
    %233 = vmatprep.subr.mxu0 0.0
    %234 = vmatpush1.msra.mxu0 0.0
    %235 = vmatprep.subr.mxu0 0.0
    %236 = vmatpush1.msra.mxu0 0.0
    %237 = vmatprep.subr.mxu0 0.0
    %238 = vmatpush1.msra.mxu0 0.0
    %239 = vmatprep.subr.mxu0 0.0
    %240 = vmatpush1.msra.mxu0 0.0
    %241 = vmatprep.subr.mxu0 0.0
    %242 = vmatpush1.msra.mxu0 0.0
    %243 = vmatprep.subr.mxu0 0.0
    %244 = vmatpush1.msra.mxu0 0.0
    %245 = vmatprep.subr.mxu0 0.0
    %246 = vmatpush1.msra.mxu0 0.0
    %247 = vmatprep.subr.mxu0 0.0
    %248 = vmatpush1.msra.mxu0 0.0
    %249 = vmatprep.subr.mxu0 0.0
    %250 = vmatpush1.msra.mxu0 0.0
    %251 = vmatprep.subr.mxu0 0.0
    %252 = vmatpush1.msra.mxu0 0.0
    %253 = vmatprep.subr.mxu0 0.0
    %254 = vmatpush1.msra.mxu0 0.0
    %255 = vmatprep.subr.mxu0 0.0
    %256 = vmatpush1.msra.mxu0 0.0
    %257 = vmatprep.mubr.f32.mxu0 0.0
    %258 = vmatmul.mubr.f32.gmra.mrb[0].mxu0 %v191
    %v259 = vpop.f32.mrb[0].mxu0
    %v260 = vadd.f32 0.0, %v259
    %v261 = vpop.f32.mrb[0].mxu0
    %262 = vdwg.mxu0
    %v264 = vsel %vm167, %v189, 0
    %266 = vmatprep.subr.mxu0 0.0
    %267 = vmatpush1.msra.mxu0 %v24
    %268 = vmatprep.subr.mxu0 0.0
    %269 = vmatpush1.msra.mxu0 0.0
    %270 = vmatprep.subr.mxu0 0.0
    %271 = vmatpush1.msra.mxu0 0.0
    %272 = vmatprep.subr.mxu0 0.0
    %273 = vmatpush1.msra.mxu0 0.0
    %274 = vmatprep.subr.mxu0 0.0
    %275 = vmatpush1.msra.mxu0 0.0
    %276 = vmatprep.subr.mxu0 0.0
    %277 = vmatpush1.msra.mxu0 0.0
    %278 = vmatprep.subr.mxu0 0.0
    %279 = vmatpush1.msra.mxu0 0.0
    %280 = vmatprep.subr.mxu0 0.0
    %281 = vmatpush1.msra.mxu0 0.0
    %282 = vmatprep.subr.mxu0 0.0
    %283 = vmatpush1.msra.mxu0 0.0
    %284 = vmatprep.subr.mxu0 0.0
    %285 = vmatpush1.msra.mxu0 0.0
    %286 = vmatprep.subr.mxu0 0.0
    %287 = vmatpush1.msra.mxu0 0.0
    %288 = vmatprep.subr.mxu0 0.0
    %289 = vmatpush1.msra.mxu0 0.0
    %290 = vmatprep.subr.mxu0 0.0
    %291 = vmatpush1.msra.mxu0 0.0
    %292 = vmatprep.subr.mxu0 0.0
    %293 = vmatpush1.msra.mxu0 0.0
    %294 = vmatprep.subr.mxu0 0.0
    %295 = vmatpush1.msra.mxu0 0.0
    %296 = vmatprep.subr.mxu0 0.0
    %297 = vmatpush1.msra.mxu0 0.0
    %298 = vmatprep.subr.mxu0 0.0
    %299 = vmatpush1.msra.mxu0 0.0
    %300 = vmatprep.subr.mxu0 0.0
    %301 = vmatpush1.msra.mxu0 0.0
    %302 = vmatprep.subr.mxu0 0.0
    %303 = vmatpush1.msra.mxu0 0.0
    %304 = vmatprep.subr.mxu0 0.0
    %305 = vmatpush1.msra.mxu0 0.0
    %306 = vmatprep.subr.mxu0 0.0
    %307 = vmatpush1.msra.mxu0 0.0
    %308 = vmatprep.subr.mxu0 0.0
    %309 = vmatpush1.msra.mxu0 0.0
    %310 = vmatprep.subr.mxu0 0.0
    %311 = vmatpush1.msra.mxu0 0.0
    %312 = vmatprep.subr.mxu0 0.0
    %313 = vmatpush1.msra.mxu0 0.0
    %314 = vmatprep.subr.mxu0 0.0
    %315 = vmatpush1.msra.mxu0 0.0
    %316 = vmatprep.subr.mxu0 0.0
    %317 = vmatpush1.msra.mxu0 0.0
    %318 = vmatprep.subr.mxu0 0.0
    %319 = vmatpush1.msra.mxu0 0.0
    %320 = vmatprep.subr.mxu0 0.0
    %321 = vmatpush1.msra.mxu0 0.0
    %322 = vmatprep.subr.mxu0 0.0
    %323 = vmatpush1.msra.mxu0 0.0
    %324 = vmatprep.subr.mxu0 0.0
    %325 = vmatpush1.msra.mxu0 0.0
    %326 = vmatprep.subr.mxu0 0.0
    %327 = vmatpush1.msra.mxu0 0.0
    %328 = vmatprep.subr.mxu0 0.0
    %329 = vmatpush1.msra.mxu0 0.0
    %330 = vmatprep.mubr.f32.mxu0 0.0
    %331 = vmatmul.mubr.f32.gmra.mrb[0].mxu0 %v264
    %v332 = vpop.f32.mrb[0].mxu0
    %v333 = vadd.f32 0.0, %v332
    %v334 = vpop.f32.mrb[0].mxu0
    %335 = vdwg.mxu0
    %336 = vst [vmem:[#allocation5] sm:$0xff] %v260
    %337 = vst [vmem:[#allocation5 + $0x8] sm:$0xff] %v333
    // Predicated region
    $region10: #{tpu_custom_call.1} parent=1 // pred_check
      _
    $region11: #{tpu_custom_call.1} parent=1 // pred_check_branch
      %339 = sbr.rel (0) target = $region13
    $region12: #{tpu_custom_call.1} parent=1 // pred_region
      %s341 = ssub.s32 256, 256
      %342 = vsyncadd [#allocation4], %s341
      %s343 = sshll.u32 [#allocation5], 4
      %s344 = int_to_ptr.vmem [resolvable:$true] %s343
      %349 = dma.vmem_to_hbm [thread:$0]  %s344, 256, %s1, [#allocation4], 128, 128, 8
    $region13: #{tpu_custom_call.1} parent=1 // pred_fallthru
      _
    // Predicated region
    $region14: #{tpu_custom_call.1} parent=1 // pred_check
      _
    $region15: #{tpu_custom_call.1} parent=1 // pred_check_branch
      %351 = sbr.rel (0) target = $region17
    $region16: #{tpu_custom_call.1} parent=1 // pred_region
      %352 = dma.done [#allocation4], 256
    $region17: #{tpu_custom_call.1} parent=1 // pred_fallthru
      _
    %353 = vsyncpa [#allocation3], 1
    %354 = vsyncpa [#allocation4], 1

</llo_original>
